<compile_context>
chip_gen: v5e
topology: v5e:2x2
jax: 0.10.0
libtpu: 0.0.40
codegen_flags: <defaults>
</compile_context>

<pallas_src>
import jax
import jax.numpy as jnp
from jax.experimental import pallas as pl
from jax.experimental.pallas import tpu as pltpu


def ae_encoder_kernel(x_ref, w1_ref, b1_ref, w2_ref, b2_ref,
                      w3_ref, b3_ref, w4_ref, b4_ref, out_ref):
    def leaky_relu(v):
        # LeakyReLU(0.2): max(v, 0.2*v) == v if v>=0 else 0.2*v (single VALU pass).
        return jnp.maximum(v, jnp.float32(0.2) * v)

    z = x_ref[...]                                                   # (tm, n_input)
    z = leaky_relu(
        jnp.dot(z, w1_ref[...], preferred_element_type=jnp.float32) + b1_ref[...])
    z = leaky_relu(
        jnp.dot(z.astype(w2_ref.dtype), w2_ref[...],
                preferred_element_type=jnp.float32) + b2_ref[...])
    z = leaky_relu(
        jnp.dot(z.astype(w3_ref.dtype), w3_ref[...],
                preferred_element_type=jnp.float32) + b3_ref[...])
    z_ae = (jnp.dot(z.astype(w4_ref.dtype), w4_ref[...],
                    preferred_element_type=jnp.float32) + b4_ref[...])
    out_ref[...] = z_ae.astype(out_ref.dtype)                       # (tm, n_z)


def ae_encoder_forward(x, w1, b1, w2, b2, w3, b3, w4, b4,
                       *, block_rows=512, use_bf16=False):
    """x: (N, n_input); wK: (out_k, in_k) torch nn.Linear convention; bK: (out_k,)."""
    n, n_input = x.shape

    # Pre-transpose once in the wrapper -> every in-kernel matmul is row-major.
    w1t, w2t, w3t, w4t = w1.T, w2.T, w3.T, w4.T                      # (in, out)
    b1r, b2r, b3r, b4r = (b.reshape(1, -1).astype(jnp.float32)
                          for b in (b1, b2, b3, b4))                 # (1, out)
    d1, d2, d3, dz = w1t.shape[1], w2t.shape[1], w3t.shape[1], w4t.shape[1]

    # Optional bf16 MXU inputs (accumulation stays f32). Default off: keeps
    # the 1e-5 tolerance vs. the f32 reference.
    mm_dtype = jnp.bfloat16 if use_bf16 else jnp.float32
    x_in = x.astype(mm_dtype)
    w1t, w2t, w3t, w4t = (w.astype(mm_dtype) for w in (w1t, w2t, w3t, w4t))

    # Row tiling: big tiles amortize the ~0.35us/grid-step overhead and fill
    # more MXU rows per weight push. Small batches get one sublane-aligned
    # block. The batch is padded up to a multiple of the tile — never make the
    # whole (possibly huge) batch a single block.
    if n >= block_rows:
        tm = block_rows
    else:
        tm = max(8, ((n + 7) // 8) * 8)
    n_pad = pl.cdiv(n, tm) * tm
    if n_pad != n:
        x_in = jnp.pad(x_in, ((0, n_pad - n), (0, 0)))
    grid = (n_pad // tm,)

    row_map = lambda i: (i, 0)       # x / output: march down the row axis
    full_map = lambda i: (0, 0)      # weights / biases: same full block every step

    def const_spec(shape):
        # Constant blocks are fetched once; single-buffer them so they don't
        # burn 2x VMEM. Fall back silently if pipeline_mode isn't supported.
        try:
            return pl.BlockSpec(shape, full_map, pipeline_mode=pl.Buffered(1))
        except Exception:
            return pl.BlockSpec(shape, full_map)

    # Advisory cost estimate for XLA's scheduler around the custom call.
    elem = 2 if use_bf16 else 4
    flops = 2 * n_pad * (n_input * d1 + d1 * d2 + d2 * d3 + d3 * dz)
    bytes_accessed = (elem * (n_pad * n_input
                              + n_input * d1 + d1 * d2 + d2 * d3 + d3 * dz)
                      + 4 * (d1 + d2 + d3 + dz)
                      + 4 * n_pad * dz)
    cost = pl.CostEstimate(flops=flops, transcendentals=0,
                           bytes_accessed=bytes_accessed)

    # Only raise scoped VMEM when the tile is swept large (v5e default 16 MiB).
    vmem_limit = 64 * 1024 * 1024 if tm >= 2048 else None

    out = pl.pallas_call(
        ae_encoder_kernel,
        out_shape=jax.ShapeDtypeStruct((n_pad, dz), jnp.float32),
        grid=grid,
        in_specs=[
            pl.BlockSpec((tm, n_input), row_map),
            const_spec((n_input, d1)),
            const_spec((1, d1)),
            const_spec((d1, d2)),
            const_spec((1, d2)),
            const_spec((d2, d3)),
            const_spec((1, d3)),
            const_spec((d3, dz)),
            const_spec((1, dz)),
        ],
        out_specs=pl.BlockSpec((tm, dz), row_map),
        compiler_params=pltpu.CompilerParams(
            dimension_semantics=("parallel",),
            vmem_limit_bytes=vmem_limit),
        cost_estimate=cost,
    )(x_in, w1t, b1r, w2t, b2r, w3t, b3r, w4t, b4r)

    return out[:n] if n_pad != n else out


def reference_forward(x, w1, b1, w2, b2, w3, b3, w4, b4):
    def leaky(v):
        return jnp.where(v >= 0, v, 0.2 * v)
    z = leaky(x @ w1.T + b1)
    z = leaky(z @ w2.T + b2)
    z = leaky(z @ w3.T + b3)
    return z @ w4.T + b4


if __name__ == "__main__":
    # Shapes consistent with the module:
    #   n_input=64, ae_n_enc_1=128, ae_n_enc_2=128, ae_n_enc_3=64, n_z=32
    N_INPUT = 64
    AE_N_ENC_1, AE_N_ENC_2, AE_N_ENC_3, N_Z = 128, 128, 64, 32

    key = jax.random.PRNGKey(0)
    keys = jax.random.split(key, 9)

    # torch nn.Linear weight convention: (out_features, in_features)
    w1 = jax.random.normal(keys[1], (AE_N_ENC_1, N_INPUT), dtype=jnp.float32) * 0.1
    b1 = jax.random.normal(keys[2], (AE_N_ENC_1,), dtype=jnp.float32) * 0.1
    w2 = jax.random.normal(keys[3], (AE_N_ENC_2, AE_N_ENC_1), dtype=jnp.float32) * 0.1
    b2 = jax.random.normal(keys[4], (AE_N_ENC_2,), dtype=jnp.float32) * 0.1
    w3 = jax.random.normal(keys[5], (AE_N_ENC_3, AE_N_ENC_2), dtype=jnp.float32) * 0.1
    b3 = jax.random.normal(keys[6], (AE_N_ENC_3,), dtype=jnp.float32) * 0.1
    w4 = jax.random.normal(keys[7], (N_Z, AE_N_ENC_3), dtype=jnp.float32) * 0.1
    b4 = jax.random.normal(keys[8], (N_Z,), dtype=jnp.float32) * 0.1

    ok = True

    # Check 1: tiny batch (single sublane-aligned block).
    x_small = jax.random.normal(keys[0], (8, N_INPUT), dtype=jnp.float32)
    out_small = jax.block_until_ready(
        ae_encoder_forward(x_small, w1, b1, w2, b2, w3, b3, w4, b4))
    ref_small = reference_forward(x_small, w1, b1, w2, b2, w3, b3, w4, b4)
    ok &= out_small.shape == (8, N_Z)
    ok &= bool(jnp.allclose(out_small, ref_small, atol=1e-5, rtol=1e-5))

    # Check 2: batch not a multiple of the tile -> exercises padding,
    # multi-step grid (2 steps at block_rows=512), and the parallel axis.
    x_big = jax.random.normal(keys[0], (1000, N_INPUT), dtype=jnp.float32)
    out_big = jax.block_until_ready(
        ae_encoder_forward(x_big, w1, b1, w2, b2, w3, b3, w4, b4))
    ref_big = reference_forward(x_big, w1, b1, w2, b2, w3, b3, w4, b4)
    ok &= out_big.shape == (1000, N_Z)
    ok &= bool(jnp.allclose(out_big, ref_big, atol=1e-5, rtol=1e-5))

    assert ok, "mismatch vs reference"
    print("KERNEL_OK")
</pallas_src>

<mosaic_0001>
module attributes {stable_mosaic.version = 11 : i64} {
  func.func @ae_encoder_kernel(%arg0: i32, %arg1: memref<8x64xf32, #tpu.memory_space<vmem>>, %arg2: memref<64x128xf32, #tpu.memory_space<vmem>>, %arg3: memref<1x128xf32, #tpu.memory_space<vmem>>, %arg4: memref<128x128xf32, #tpu.memory_space<vmem>>, %arg5: memref<1x128xf32, #tpu.memory_space<vmem>>, %arg6: memref<128x64xf32, #tpu.memory_space<vmem>>, %arg7: memref<1x64xf32, #tpu.memory_space<vmem>>, %arg8: memref<64x32xf32, #tpu.memory_space<vmem>>, %arg9: memref<1x32xf32, #tpu.memory_space<vmem>>, %arg10: memref<8x32xf32, #tpu.memory_space<vmem>>) attributes {dimension_semantics = [#tpu.dimension_semantics<parallel>], iteration_bounds = array<i64: 1>, scalar_prefetch = 0 : i64, scratch_operands = 0 : i64, tpu.core_type = #tpu.core_type<tc>, window_params = [{transform_indices = @transform_0, window_bounds = array<i64: 8, 64>}, {pipeline_mode = #tpu.pipeline_mode<synchronous>, transform_indices = @transform_1, window_bounds = array<i64: 64, 128>}, {pipeline_mode = #tpu.pipeline_mode<synchronous>, transform_indices = @transform_2, window_bounds = array<i64: 1, 128>}, {pipeline_mode = #tpu.pipeline_mode<synchronous>, transform_indices = @transform_3, window_bounds = array<i64: 128, 128>}, {pipeline_mode = #tpu.pipeline_mode<synchronous>, transform_indices = @transform_4, window_bounds = array<i64: 1, 128>}, {pipeline_mode = #tpu.pipeline_mode<synchronous>, transform_indices = @transform_5, window_bounds = array<i64: 128, 64>}, {pipeline_mode = #tpu.pipeline_mode<synchronous>, transform_indices = @transform_6, window_bounds = array<i64: 1, 64>}, {pipeline_mode = #tpu.pipeline_mode<synchronous>, transform_indices = @transform_7, window_bounds = array<i64: 64, 32>}, {pipeline_mode = #tpu.pipeline_mode<synchronous>, transform_indices = @transform_8, window_bounds = array<i64: 1, 32>}, {transform_indices = @transform_9, window_bounds = array<i64: 8, 32>}]} {
    %c0 = arith.constant 0 : index
    %c0_0 = arith.constant 0 : index
    %0 = vector.load %arg1[%c0, %c0_0] : memref<8x64xf32, #tpu.memory_space<vmem>>, vector<8x64xf32>
    %c0_1 = arith.constant 0 : index
    %c0_2 = arith.constant 0 : index
    %1 = vector.load %arg2[%c0_1, %c0_2] : memref<64x128xf32, #tpu.memory_space<vmem>>, vector<64x128xf32>
    %cst = arith.constant dense<0.000000e+00> : vector<8x128xf32>
    %2 = tpu.matmul %0, %1, %cst {dimension_numbers = #tpu.dot_dimension_numbers<[1], [0], [0], [1], [0, 0, 1, 1], [], []>} : vector<8x64xf32>, vector<64x128xf32>, vector<8x128xf32> -> vector<8x128xf32>
    %c0_3 = arith.constant 0 : index
    %c0_4 = arith.constant 0 : index
    %3 = vector.load %arg3[%c0_3, %c0_4] : memref<1x128xf32, #tpu.memory_space<vmem>>, vector<1x128xf32>
    %4 = vector.broadcast %3 : vector<1x128xf32> to vector<8x128xf32>
    %5 = arith.addf %2, %4 : vector<8x128xf32>
    %cst_5 = arith.constant 2.000000e-01 : f32
    %6 = vector.broadcast %cst_5 : f32 to vector<8x128xf32>
    %7 = arith.mulf %6, %5 : vector<8x128xf32>
    %8 = arith.maximumf %5, %7 : vector<8x128xf32>
    %c0_6 = arith.constant 0 : index
    %c0_7 = arith.constant 0 : index
    %9 = vector.load %arg4[%c0_6, %c0_7] : memref<128x128xf32, #tpu.memory_space<vmem>>, vector<128x128xf32>
    %cst_8 = arith.constant dense<0.000000e+00> : vector<8x128xf32>
    %10 = tpu.matmul %8, %9, %cst_8 {dimension_numbers = #tpu.dot_dimension_numbers<[1], [0], [0], [1], [0, 0, 1, 1], [], []>} : vector<8x128xf32>, vector<128x128xf32>, vector<8x128xf32> -> vector<8x128xf32>
    %c0_9 = arith.constant 0 : index
    %c0_10 = arith.constant 0 : index
    %11 = vector.load %arg5[%c0_9, %c0_10] : memref<1x128xf32, #tpu.memory_space<vmem>>, vector<1x128xf32>
    %12 = vector.broadcast %11 : vector<1x128xf32> to vector<8x128xf32>
    %13 = arith.addf %10, %12 : vector<8x128xf32>
    %cst_11 = arith.constant 2.000000e-01 : f32
    %14 = vector.broadcast %cst_11 : f32 to vector<8x128xf32>
    %15 = arith.mulf %14, %13 : vector<8x128xf32>
    %16 = arith.maximumf %13, %15 : vector<8x128xf32>
    %c0_12 = arith.constant 0 : index
    %c0_13 = arith.constant 0 : index
    %17 = vector.load %arg6[%c0_12, %c0_13] : memref<128x64xf32, #tpu.memory_space<vmem>>, vector<128x64xf32>
    %cst_14 = arith.constant dense<0.000000e+00> : vector<8x64xf32>
    %18 = tpu.matmul %16, %17, %cst_14 {dimension_numbers = #tpu.dot_dimension_numbers<[1], [0], [0], [1], [0, 0, 1, 1], [], []>} : vector<8x128xf32>, vector<128x64xf32>, vector<8x64xf32> -> vector<8x64xf32>
    %c0_15 = arith.constant 0 : index
    %c0_16 = arith.constant 0 : index
    %19 = vector.load %arg7[%c0_15, %c0_16] : memref<1x64xf32, #tpu.memory_space<vmem>>, vector<1x64xf32>
    %20 = vector.broadcast %19 : vector<1x64xf32> to vector<8x64xf32>
    %21 = arith.addf %18, %20 : vector<8x64xf32>
    %cst_17 = arith.constant 2.000000e-01 : f32
    %22 = vector.broadcast %cst_17 : f32 to vector<8x64xf32>
    %23 = arith.mulf %22, %21 : vector<8x64xf32>
    %24 = arith.maximumf %21, %23 : vector<8x64xf32>
    %c0_18 = arith.constant 0 : index
    %c0_19 = arith.constant 0 : index
    %25 = vector.load %arg8[%c0_18, %c0_19] : memref<64x32xf32, #tpu.memory_space<vmem>>, vector<64x32xf32>
    %cst_20 = arith.constant dense<0.000000e+00> : vector<8x32xf32>
    %26 = tpu.matmul %24, %25, %cst_20 {dimension_numbers = #tpu.dot_dimension_numbers<[1], [0], [0], [1], [0, 0, 1, 1], [], []>} : vector<8x64xf32>, vector<64x32xf32>, vector<8x32xf32> -> vector<8x32xf32>
    %c0_21 = arith.constant 0 : index
    %c0_22 = arith.constant 0 : index
    %27 = vector.load %arg9[%c0_21, %c0_22] : memref<1x32xf32, #tpu.memory_space<vmem>>, vector<1x32xf32>
    %28 = vector.broadcast %27 : vector<1x32xf32> to vector<8x32xf32>
    %29 = arith.addf %26, %28 : vector<8x32xf32>
    %c0_23 = arith.constant 0 : index
    %c0_24 = arith.constant 0 : index
    %30 = vector.load %arg10[%c0_23, %c0_24] : memref<8x32xf32, #tpu.memory_space<vmem>>, vector<8x32xf32>
    tpu.vector_store %arg10[%c0_23, %c0_24], %29 {strides = array<i32>} : memref<8x32xf32, #tpu.memory_space<vmem>>, vector<8x32xf32>,
    return
  }
  func.func @transform_0(%arg0: i32) -> (i32, i32) {
    %c0_i32 = arith.constant 0 : i32
    %c0_i32_0 = arith.constant 0 : i32
    return %arg0, %c0_i32 : i32, i32
  }
  func.func @transform_1(%arg0: i32) -> (i32, i32) {
    %c0_i32 = arith.constant 0 : i32
    %c0_i32_0 = arith.constant 0 : i32
    %c0_i32_1 = arith.constant 0 : i32
    return %c0_i32, %c0_i32_0 : i32, i32
  }
  func.func @transform_2(%arg0: i32) -> (i32, i32) {
    %c0_i32 = arith.constant 0 : i32
    %c0_i32_0 = arith.constant 0 : i32
    %c0_i32_1 = arith.constant 0 : i32
    return %c0_i32, %c0_i32_0 : i32, i32
  }
  func.func @transform_3(%arg0: i32) -> (i32, i32) {
    %c0_i32 = arith.constant 0 : i32
    %c0_i32_0 = arith.constant 0 : i32
    %c0_i32_1 = arith.constant 0 : i32
    return %c0_i32, %c0_i32_0 : i32, i32
  }
  func.func @transform_4(%arg0: i32) -> (i32, i32) {
    %c0_i32 = arith.constant 0 : i32
    %c0_i32_0 = arith.constant 0 : i32
    %c0_i32_1 = arith.constant 0 : i32
    return %c0_i32, %c0_i32_0 : i32, i32
  }
  func.func @transform_5(%arg0: i32) -> (i32, i32) {
    %c0_i32 = arith.constant 0 : i32
    %c0_i32_0 = arith.constant 0 : i32
    %c0_i32_1 = arith.constant 0 : i32
    return %c0_i32, %c0_i32_0 : i32, i32
  }
  func.func @transform_6(%arg0: i32) -> (i32, i32) {
    %c0_i32 = arith.constant 0 : i32
    %c0_i32_0 = arith.constant 0 : i32
    %c0_i32_1 = arith.constant 0 : i32
    return %c0_i32, %c0_i32_0 : i32, i32
  }
  func.func @transform_7(%arg0: i32) -> (i32, i32) {
    %c0_i32 = arith.constant 0 : i32
    %c0_i32_0 = arith.constant 0 : i32
    %c0_i32_1 = arith.constant 0 : i32
    return %c0_i32, %c0_i32_0 : i32, i32
  }
  func.func @transform_8(%arg0: i32) -> (i32, i32) {
    %c0_i32 = arith.constant 0 : i32
    %c0_i32_0 = arith.constant 0 : i32
    %c0_i32_1 = arith.constant 0 : i32
    return %c0_i32, %c0_i32_0 : i32, i32
  }
  func.func @transform_9(%arg0: i32) -> (i32, i32) {
    %c0_i32 = arith.constant 0 : i32
    %c0_i32_0 = arith.constant 0 : i32
    return %arg0, %c0_i32 : i32, i32
  }
}

</mosaic_0001>

<llo_original>
// kernel: tpu_custom_call.1
$region0: #{tpu_custom_call.1}
  #allocation0 [shape = 'u32[]', space=smem, size = 0x4, offset = 0x4, fixed_abs, tag = 'smem constant byte address 0x4 - core index']
  #allocation1 [shape = 'u32[72,128]{1,0:T(1,128)}', space=vmem, size = 0x9000, scoped, tag = 'internal scratch']
  %s0 = inlined_call_operand.vmem [shape: f32[8,64], index: 0, kind: input, shape index: {}]
  %s1 = inlined_call_operand.vmem [shape: f32[64,128], index: 1, kind: input, shape index: {}]
  %s2 = inlined_call_operand.vmem [shape: f32[1,128], index: 2, kind: input, shape index: {}]
  %s3 = inlined_call_operand.vmem [shape: f32[128,128], index: 3, kind: input, shape index: {}]
  %s4 = inlined_call_operand.vmem [shape: f32[1,128], index: 4, kind: input, shape index: {}]
  %s5 = inlined_call_operand.vmem [shape: f32[128,64], index: 5, kind: input, shape index: {}]
  %s6 = inlined_call_operand.vmem [shape: f32[1,64], index: 6, kind: input, shape index: {}]
  %s7 = inlined_call_operand.vmem [shape: f32[64,32], index: 7, kind: input, shape index: {}]
  %s8 = inlined_call_operand.vmem [shape: f32[1,32], index: 8, kind: input, shape index: {}]
  %s9 = inlined_call_operand.hbm [shape: f32[8,32], index: 9, kind: output, shape index: {}]
  %s10 = sld [smem:[#allocation0]]
  $region46: #{tpu_custom_call.1} parent=0
    _
  %s12 = ssub.s32 1, %s10
  %s13 = scalar_select 0, %s12, %s10
  $region1: #{tpu_custom_call.1} parent=0
    #allocation2 [shape = 'u8[4096]{0}', space=vmem, size = 0x1000, scoped, tag = 'output window, operand 0, single buffered']
    #allocation3 [shape = 's32[1]{0}', space=sflag, size = 0x4, scoped, tag = 'scoped memory for tpu_custom_call.1']
    %14 = vsyncpa [#allocation3], 0
    // Predicated region
    $region2: #{tpu_custom_call.1} parent=1 // pred_check
      _
    $region3: #{tpu_custom_call.1} parent=1 // pred_check_branch
      %16 = sbr.rel (0) target = $region5
    $region4: #{tpu_custom_call.1} parent=1 // pred_region
      _
    $region5: #{tpu_custom_call.1} parent=1 // pred_fallthru
      _
    // Predicated region
    $region6: #{tpu_custom_call.1} parent=1 // pred_check
      _
    $region7: #{tpu_custom_call.1} parent=1 // pred_check_branch
      %18 = sbr.rel (0) target = $region9
    $region8: #{tpu_custom_call.1} parent=1 // pred_region
      _
    $region9: #{tpu_custom_call.1} parent=1 // pred_fallthru
      _
    // Predicated region
    $region10: #{tpu_custom_call.1} parent=1 // pred_check
      _
    $region11: #{tpu_custom_call.1} parent=1 // pred_check_branch
      %20 = sbr.rel (0) target = $region13
    $region12: #{tpu_custom_call.1} parent=1 // pred_region
      _
    $region13: #{tpu_custom_call.1} parent=1 // pred_fallthru
      _
    // Predicated region
    $region14: #{tpu_custom_call.1} parent=1 // pred_check
      _
    $region15: #{tpu_custom_call.1} parent=1 // pred_check_branch
      %22 = sbr.rel (0) target = $region17
    $region16: #{tpu_custom_call.1} parent=1 // pred_region
      _
    $region17: #{tpu_custom_call.1} parent=1 // pred_fallthru
      _
    // Predicated region
    $region18: #{tpu_custom_call.1} parent=1 // pred_check
      _
    $region19: #{tpu_custom_call.1} parent=1 // pred_check_branch
      %24 = sbr.rel (0) target = $region21
    $region20: #{tpu_custom_call.1} parent=1 // pred_region
      _
    $region21: #{tpu_custom_call.1} parent=1 // pred_fallthru
      _
    // Predicated region
    $region22: #{tpu_custom_call.1} parent=1 // pred_check
      _
    $region23: #{tpu_custom_call.1} parent=1 // pred_check_branch
      %26 = sbr.rel (0) target = $region25
    $region24: #{tpu_custom_call.1} parent=1 // pred_region
      _
    $region25: #{tpu_custom_call.1} parent=1 // pred_fallthru
      _
    // Predicated region
    $region26: #{tpu_custom_call.1} parent=1 // pred_check
      _
    $region27: #{tpu_custom_call.1} parent=1 // pred_check_branch
      %28 = sbr.rel (0) target = $region29
    $region28: #{tpu_custom_call.1} parent=1 // pred_region
      _
    $region29: #{tpu_custom_call.1} parent=1 // pred_fallthru
      _
    // Predicated region
    $region30: #{tpu_custom_call.1} parent=1 // pred_check
      _
    $region31: #{tpu_custom_call.1} parent=1 // pred_check_branch
      %30 = sbr.rel (0) target = $region33
    $region32: #{tpu_custom_call.1} parent=1 // pred_region
      _
    $region33: #{tpu_custom_call.1} parent=1 // pred_fallthru
      _
    // Predicated region
    $region34: #{tpu_custom_call.1} parent=1 // pred_check
      _
    $region35: #{tpu_custom_call.1} parent=1 // pred_check_branch
      %32 = sbr.rel (0) target = $region37
    $region36: #{tpu_custom_call.1} parent=1 // pred_region
      _
    $region37: #{tpu_custom_call.1} parent=1 // pred_fallthru
      _
    %v33 = vld [vmem:[%s0] sm:$0xff]
    %v34 = vld [vmem:[%s1] sm:$0xff]
    %v35 = vld [vmem:[%s1 + $0x8] sm:$0xff]
    %v36 = vld [vmem:[%s1 + $0x10] sm:$0xff]
    %v37 = vld [vmem:[%s1 + $0x18] sm:$0xff]
    %v38 = vld [vmem:[%s1 + $0x20] sm:$0xff]
    %v39 = vld [vmem:[%s1 + $0x28] sm:$0xff]
    %v40 = vld [vmem:[%s1 + $0x30] sm:$0xff]
    %v41 = vld [vmem:[%s1 + $0x38] sm:$0xff]
    %v42 = vld [vmem:[%s2] sm:$0x1]
    %v44 = vperm.slane %v42, 0
    %vm46 = vcmask 523264
    %v48 = vsel %vm46, %v33, 0
    %50 = vmatpush.msra.mxu0 0.0
    %51 = vmatpush.msra.mxu0 0.0
    %52 = vmatpush.msra.mxu0 0.0
    %53 = vmatpush.msra.mxu0 0.0
    %54 = vmatpush.msra.mxu0 0.0
    %55 = vmatpush.msra.mxu0 0.0
    %56 = vmatpush.msra.mxu0 0.0
    %57 = vmatpush.msra.mxu0 0.0
    %58 = vmatpush.msra.mxu0 %v41
    %59 = vmatpush.msra.mxu0 %v40
    %60 = vmatpush.msra.mxu0 %v39
    %61 = vmatpush.msra.mxu0 %v38
    %62 = vmatpush.msra.mxu0 %v37
    %63 = vmatpush.msra.mxu0 %v36
    %64 = vmatpush.msra.mxu0 %v35
    %65 = vmatpush.msra.mxu0 %v34
    %66 = vmatmul.f32.gmra.mxu0 %v48
    %v67 = vpop.f32.mrf.mxu0
    %v68 = vadd.f32 %v44, %v67
    %69 = vdwg.mxu0
    %v70 = vmul.f32 %v68, 0.2
    %v71 = vmax.f32 %v68, %v70
    %v72 = vld [vmem:[%s3] sm:$0xff]
    %v73 = vld [vmem:[%s3 + $0x8] sm:$0xff]
    %v74 = vld [vmem:[%s3 + $0x10] sm:$0xff]
    %v75 = vld [vmem:[%s3 + $0x18] sm:$0xff]
    %v76 = vld [vmem:[%s3 + $0x20] sm:$0xff]
    %v77 = vld [vmem:[%s3 + $0x28] sm:$0xff]
    %v78 = vld [vmem:[%s3 + $0x30] sm:$0xff]
    %v79 = vld [vmem:[%s3 + $0x38] sm:$0xff]
    %v80 = vld [vmem:[%s3 + $0x40] sm:$0xff]
    %v81 = vld [vmem:[%s3 + $0x48] sm:$0xff]
    %v82 = vld [vmem:[%s3 + $0x50] sm:$0xff]
    %v83 = vld [vmem:[%s3 + $0x58] sm:$0xff]
    %v84 = vld [vmem:[%s3 + $0x60] sm:$0xff]
    %v85 = vld [vmem:[%s3 + $0x68] sm:$0xff]
    %v86 = vld [vmem:[%s3 + $0x70] sm:$0xff]
    %v87 = vld [vmem:[%s3 + $0x78] sm:$0xff]
    %v88 = vld [vmem:[%s4] sm:$0x1]
    %v90 = vperm.slane %v88, 0
    %92 = vmatpush.msra.mxu0 %v87
    %93 = vmatpush.msra.mxu0 %v86
    %94 = vmatpush.msra.mxu0 %v85
    %95 = vmatpush.msra.mxu0 %v84
    %96 = vmatpush.msra.mxu0 %v83
    %97 = vmatpush.msra.mxu0 %v82
    %98 = vmatpush.msra.mxu0 %v81
    %99 = vmatpush.msra.mxu0 %v80
    %100 = vmatpush.msra.mxu0 %v79
    %101 = vmatpush.msra.mxu0 %v78
    %102 = vmatpush.msra.mxu0 %v77
    %103 = vmatpush.msra.mxu0 %v76
    %104 = vmatpush.msra.mxu0 %v75
    %105 = vmatpush.msra.mxu0 %v74
    %106 = vmatpush.msra.mxu0 %v73
    %107 = vmatpush.msra.mxu0 %v72
    %108 = vmatmul.f32.gmra.mxu0 %v71
    %v109 = vpop.f32.mrf.mxu0
    %v110 = vadd.f32 %v90, %v109
    %111 = vdwg.mxu0
    %v112 = vmul.f32 %v110, 0.2
    %v113 = vmax.f32 %v110, %v112
    %v114 = vld [vmem:[%s5] sm:$0xff]
    %v115 = vld [vmem:[%s5 + $0x8] sm:$0xff]
    %v116 = vld [vmem:[%s5 + $0x10] sm:$0xff]
    %v117 = vld [vmem:[%s5 + $0x18] sm:$0xff]
    %v118 = vld [vmem:[%s5 + $0x20] sm:$0xff]
    %v119 = vld [vmem:[%s5 + $0x28] sm:$0xff]
    %v120 = vld [vmem:[%s5 + $0x30] sm:$0xff]
    %v121 = vld [vmem:[%s5 + $0x38] sm:$0xff]
    %v122 = vld [vmem:[%s5 + $0x40] sm:$0xff]
    %v123 = vld [vmem:[%s5 + $0x48] sm:$0xff]
    %v124 = vld [vmem:[%s5 + $0x50] sm:$0xff]
    %v125 = vld [vmem:[%s5 + $0x58] sm:$0xff]
    %v126 = vld [vmem:[%s5 + $0x60] sm:$0xff]
    %v127 = vld [vmem:[%s5 + $0x68] sm:$0xff]
    %v128 = vld [vmem:[%s5 + $0x70] sm:$0xff]
    %v129 = vld [vmem:[%s5 + $0x78] sm:$0xff]
    %v130 = vld [vmem:[%s6] sm:$0x1]
    %v132 = vperm.slane %v130, 0
    %134 = vmatpush.msra.mxu0 %v129
    %135 = vmatpush.msra.mxu0 %v128
    %136 = vmatpush.msra.mxu0 %v127
    %137 = vmatpush.msra.mxu0 %v126
    %138 = vmatpush.msra.mxu0 %v125
    %139 = vmatpush.msra.mxu0 %v124
    %140 = vmatpush.msra.mxu0 %v123
    %141 = vmatpush.msra.mxu0 %v122
    %142 = vmatpush.msra.mxu0 %v121
    %143 = vmatpush.msra.mxu0 %v120
    %144 = vmatpush.msra.mxu0 %v119
    %145 = vmatpush.msra.mxu0 %v118
    %146 = vmatpush.msra.mxu0 %v117
    %147 = vmatpush.msra.mxu0 %v116
    %148 = vmatpush.msra.mxu0 %v115
    %149 = vmatpush.msra.mxu0 %v114
    %150 = vmatmul.f32.gmra.mxu0 %v113
    %v151 = vpop.f32.mrf.mxu0
    %v152 = vadd.f32 %v132, %v151
    %153 = vdwg.mxu0
    %v154 = vmul.f32 %v152, 0.2
    %v155 = vmax.f32 %v152, %v154
    %v156 = vld [vmem:[%s7] sm:$0xff]
    %v157 = vld [vmem:[%s7 + $0x8] sm:$0xff]
    %v158 = vld [vmem:[%s7 + $0x10] sm:$0xff]
    %v159 = vld [vmem:[%s7 + $0x18] sm:$0xff]
    %v160 = vld [vmem:[%s7 + $0x20] sm:$0xff]
    %v161 = vld [vmem:[%s7 + $0x28] sm:$0xff]
    %v162 = vld [vmem:[%s7 + $0x30] sm:$0xff]
    %v163 = vld [vmem:[%s7 + $0x38] sm:$0xff]
    %v164 = vld [vmem:[%s8] sm:$0x1]
    %v166 = vperm.slane %v164, 0
    %v169 = vsel %vm46, %v155, 0
    %171 = vmatpush.msra.mxu0 0.0
    %172 = vmatpush.msra.mxu0 0.0
    %173 = vmatpush.msra.mxu0 0.0
    %174 = vmatpush.msra.mxu0 0.0
    %175 = vmatpush.msra.mxu0 0.0
    %176 = vmatpush.msra.mxu0 0.0
    %177 = vmatpush.msra.mxu0 0.0
    %178 = vmatpush.msra.mxu0 0.0
    %179 = vmatpush.msra.mxu0 %v163
    %180 = vmatpush.msra.mxu0 %v162
    %181 = vmatpush.msra.mxu0 %v161
    %182 = vmatpush.msra.mxu0 %v160
    %183 = vmatpush.msra.mxu0 %v159
    %184 = vmatpush.msra.mxu0 %v158
    %185 = vmatpush.msra.mxu0 %v157
    %186 = vmatpush.msra.mxu0 %v156
    %187 = vmatmul.f32.gmra.mxu0 %v169
    %v188 = vpop.f32.mrf.mxu0
    %v189 = vadd.f32 %v166, %v188
    %190 = vdwg.mxu0
    %vm191 = vcmask 261120
    %192 = vst.msk [vmem:[#allocation2] sm:$0xff] %vm191, %v189
    // Predicated region
    $region38: #{tpu_custom_call.1} parent=1 // pred_check
      _
    $region39: #{tpu_custom_call.1} parent=1 // pred_check_branch
      %194 = sbr.rel (0) target = $region41
    $region40: #{tpu_custom_call.1} parent=1 // pred_region
      %196 = vsyncadd [#allocation3], 0
      %s198 = sshll.u32 [#allocation2], 4
      %s199 = int_to_ptr.vmem [resolvable:$true] %s198
      %s200 = sshll.u32 %s9, 4
      %s201 = int_to_ptr.hbm [resolvable:$true] %s200
      %203 = dma.vmem_to_hbm [thread:$0]  %s199, 128, %s201, [#allocation3]
    $region41: #{tpu_custom_call.1} parent=1 // pred_fallthru
      _
    // Predicated region
    $region42: #{tpu_custom_call.1} parent=1 // pred_check
      _
    $region43: #{tpu_custom_call.1} parent=1 // pred_check_branch
      %205 = sbr.rel (0) target = $region45
    $region44: #{tpu_custom_call.1} parent=1 // pred_region
      %207 = dma.done [#allocation3], 128
    $region45: #{tpu_custom_call.1} parent=1 // pred_fallthru
      _
    %208 = vsyncpa [#allocation3], 1

</llo_original>
